<compile_context>
chip_gen: v6e
topology: v6e:2x2x1
jax: 0.10.0
libtpu: 0.0.40
codegen_flags: <defaults>
</compile_context>

<pallas_src>
import functools

import jax
import jax.numpy as jnp
from jax.experimental import pallas as pl
from jax.experimental.pallas import tpu as pltpu

BN_EPS = 1e-5
COMPUTE_DTYPE = jnp.bfloat16          # MXU-native operand dtype; acc stays f32
_VMEM_LIMIT_BYTES = 32 * 1024 * 1024  # raise v5e's 16 MiB scoped default; within v6e/v7x


# ---------------------------------------------------------------------------
# Fused kernel
# ---------------------------------------------------------------------------
def _make_fused_mlp_kernel(n_hidden, has_output, compute_dtype):
    """Kernel over refs: (x, [w_0, b_0, ..., w_{n-1}, b_{n-1}], [w_out, b_out], o)."""

    def kernel(*refs):
        x_ref, o_ref = refs[0], refs[-1]
        p = refs[1:-1]

        if n_hidden == 0:
            h_last = x_ref[...].astype(jnp.float32)
        else:
            # In-kernel cast of x (wrapper keeps x in its native dtype).
            h_lp = x_ref[...].astype(compute_dtype)
            h_last = None
            for layer in range(n_hidden):
                w = p[2 * layer][...]            # (in, out)  bf16, BN-folded
                b = p[2 * layer + 1][...]        # (1, out)   f32, BN-folded
                y = jnp.dot(h_lp, w, preferred_element_type=jnp.float32) + b
                if layer + 1 < n_hidden:
                    # ReLU + downcast fused in bf16 (exact: cast is monotone, cast(0)=0).
                    h_lp = jnp.maximum(y.astype(compute_dtype), 0)
                else:
                    # Keep the last activation in f32 for the output reduction / store.
                    h_last = jnp.maximum(y, 0.0)

        if has_output:
            # Final Linear(last_dim, 1) as VPU multiply + lane reduction — avoids a
            # width-1 MXU matmul.
            w_row = p[2 * n_hidden][...]         # (1, last_dim) f32
            b_out = p[2 * n_hidden + 1][...]     # (1, 1)        f32
            out = jnp.sum(h_last * w_row, axis=-1, keepdims=True) + b_out
            o_ref[...] = out.astype(o_ref.dtype)
        else:
            o_ref[...] = h_last.astype(o_ref.dtype)

    return kernel


# ---------------------------------------------------------------------------
# Wrapper: one pallas_call for the whole MLP
# ---------------------------------------------------------------------------
def _clamp_tile_m(tile_m, in_dim, widths):
    """Keep double-buffered x block + activations comfortably inside VMEM budget."""
    max_w = max(widths) if widths else max(in_dim, 1)
    # rough per-row footprint: 2x double-buffered x (f32 upper bound) + f32/bf16 activations
    row_bytes = 2 * 4 * in_dim + 6 * max_w + 16
    cap = max(256, ((24 * 1024 * 1024) // row_bytes) // 256 * 256)
    tile_m = min(tile_m, cap)
    return max(8, (tile_m // 8) * 8)   # second-to-last block dim must be a multiple of 8


@functools.partial(jax.jit, static_argnames=("tile_m",))
def mlp_forward(x, hidden_params, out_params, *, tile_m=2048):
    batch, in_dim = x.shape
    n_hidden = len(hidden_params)
    has_output = out_params is not None
    widths = [layer["w"].shape[1] for layer in hidden_params]
    if has_output:
        out_dim = 1
    elif n_hidden:
        out_dim = widths[-1]
    else:
        out_dim = in_dim

    operands = [x]                      # native dtype; cast happens inside the kernel
    for layer in hidden_params:
        operands += [layer["w"], layer["b"]]
    if has_output:
        operands += [out_params["w"], out_params["b"]]

    kernel = _make_fused_mlp_kernel(n_hidden, has_output, COMPUTE_DTYPE)
    out_shape = jax.ShapeDtypeStruct((batch, out_dim), jnp.float32)

    tile_m = _clamp_tile_m(tile_m, in_dim, widths)

    if batch <= tile_m:
        # Small / single-tile case: gridless call, every operand mapped whole into
        # VMEM, kernel runs exactly once (no software-pipeline machinery).
        vmem = pl.BlockSpec(memory_space=pltpu.MemorySpace.VMEM)
        return pl.pallas_call(
            kernel,
            out_shape=out_shape,
            in_specs=[vmem] * len(operands),
            out_specs=vmem,
            compiler_params=pltpu.CompilerParams(
                vmem_limit_bytes=_VMEM_LIMIT_BYTES),
        )(*operands)

    # Batch-tiled path: rows of x / out split across a parallel grid axis with a
    # cdiv grid (ragged final block handled by Pallas); weights use a constant
    # index_map so they stay resident in VMEM across grid steps.
    grid = (pl.cdiv(batch, tile_m),)
    in_specs = [pl.BlockSpec((tile_m, in_dim), lambda i: (i, 0))]
    for op in operands[1:]:
        in_specs.append(pl.BlockSpec(op.shape, lambda i, _nd=op.ndim: (0,) * _nd))
    return pl.pallas_call(
        kernel,
        out_shape=out_shape,
        grid=grid,
        in_specs=in_specs,
        out_specs=pl.BlockSpec((tile_m, out_dim), lambda i: (i, 0)),
        compiler_params=pltpu.CompilerParams(
            dimension_semantics=("parallel",),
            vmem_limit_bytes=_VMEM_LIMIT_BYTES),
    )(*operands)


# ---------------------------------------------------------------------------
# Parameters: raw (PyTorch-like) init + host-side BN folding / dtype prep
# ---------------------------------------------------------------------------
def init_mlp_params(key, input_dim, embed_dims, output_layer=True):
    """Deterministic synthetic parameters matching _MLP.__init__ shapes (fp32).
    Linear weights are stored pre-transposed as (in, out)."""
    params = []
    in_dim = input_dim
    for embed_dim in embed_dims:
        key, kw, kb, kg, kbeta, km, kv = jax.random.split(key, 7)
        params.append({
            "w": jax.random.normal(kw, (in_dim, embed_dim), jnp.float32) * 0.05,
            "b": jax.random.normal(kb, (1, embed_dim), jnp.float32) * 0.05,
            "gamma": 1.0 + 0.1 * jax.random.normal(kg, (1, embed_dim), jnp.float32),
            "beta": 0.1 * jax.random.normal(kbeta, (1, embed_dim), jnp.float32),
            "mean": 0.1 * jax.random.normal(km, (1, embed_dim), jnp.float32),
            "var": jnp.abs(1.0 + 0.1 * jax.random.normal(kv, (1, embed_dim), jnp.float32)),
        })
        in_dim = embed_dim
    out_params = None
    if output_layer:
        key, kw, kb = jax.random.split(key, 3)
        out_params = {
            "w": jax.random.normal(kw, (in_dim, 1), jnp.float32) * 0.05,
            "b": jax.random.normal(kb, (1, 1), jnp.float32) * 0.05,
        }
    return params, out_params


def fold_params(hidden_raw, out_raw):
    """Constant-fold eval-mode BatchNorm into the preceding Linear (exact in f32),
    cast MXU weight operands to COMPUTE_DTYPE, and reshape the final (in,1)
    weight to a (1,in) row for the in-kernel VPU dot-product."""
    hidden = []
    for p in hidden_raw:
        scale = p["gamma"] * jax.lax.rsqrt(p["var"] + BN_EPS)        # (1, d)
        hidden.append({
            "w": (p["w"] * scale).astype(COMPUTE_DTYPE),             # (in, d)
            "b": ((p["b"] - p["mean"]) * scale + p["beta"]).astype(jnp.float32),
        })
    out = None
    if out_raw is not None:
        out = {
            "w": out_raw["w"].reshape(1, -1).astype(jnp.float32),    # (1, last_dim)
            "b": out_raw["b"].astype(jnp.float32),                   # (1, 1)
        }
    return hidden, out


# ---------------------------------------------------------------------------
# Pure-JAX references
# ---------------------------------------------------------------------------
def mlp_reference_fp32(x, hidden_raw, out_raw):
    """Unfolded fp32 reference matching the original PyTorch module in eval()."""
    h = x
    for p in hidden_raw:
        y = h @ p["w"] + p["b"]
        y = (y - p["mean"]) * jax.lax.rsqrt(p["var"] + BN_EPS) * p["gamma"] + p["beta"]
        h = jnp.maximum(y, 0.0)
    if out_raw is not None:
        h = h @ out_raw["w"] + out_raw["b"]
    return h


def mlp_reference_folded(x, hidden, out):
    """Mirrors the kernel's numerics (folded BN, bf16 MXU operands, bf16 ReLU for
    intermediate layers, f32 last activation, f32 accumulation)."""
    n = len(hidden)
    h32 = x.astype(jnp.float32)
    h_lp = x.astype(COMPUTE_DTYPE)
    for idx, p in enumerate(hidden):
        y = jnp.dot(h_lp, p["w"], preferred_element_type=jnp.float32) + p["b"]
        if idx + 1 < n:
            h_lp = jnp.maximum(y.astype(COMPUTE_DTYPE), 0)
        else:
            h32 = jnp.maximum(y, 0.0)
    if out is not None:
        return jnp.sum(h32 * out["w"], axis=-1, keepdims=True) + out["b"]
    return h32


# ---------------------------------------------------------------------------
if __name__ == "__main__":
    key = jax.random.PRNGKey(0)
    key, kx, kp = jax.random.split(key, 3)

    input_dim, embed_dims = 32, [64, 32]
    dropout_rate = 0.2  # Dropout is identity in eval-mode forward — intentionally omitted.

    hidden_raw, out_raw = init_mlp_params(kp, input_dim, embed_dims, output_layer=True)
    hidden, out_p = fold_params(hidden_raw, out_raw)

    # --- small batch: single fused, gridless pallas_call --------------------
    x = jax.random.normal(kx, (8, input_dim), jnp.float32)
    y = jax.block_until_ready(mlp_forward(x, hidden, out_p))
    assert y.shape == (8, 1), y.shape
    assert jnp.allclose(y, mlp_reference_folded(x, hidden, out_p), atol=2e-3, rtol=2e-3), \
        "mismatch vs folded/bf16 reference"
    assert jnp.allclose(y, mlp_reference_fp32(x, hidden_raw, out_raw), atol=1e-2, rtol=1e-2), \
        "mismatch vs fp32 unfolded reference"

    # --- larger ragged batch: cdiv-tiled parallel-grid path ------------------
    key, kx2 = jax.random.split(key)
    x2 = jax.random.normal(kx2, (600, input_dim), jnp.float32)   # 600 % 256 != 0 → ragged last block
    y2 = jax.block_until_ready(mlp_forward(x2, hidden, out_p, tile_m=256))
    assert y2.shape == (600, 1), y2.shape
    assert jnp.allclose(y2, mlp_reference_folded(x2, hidden, out_p), atol=2e-3, rtol=2e-3), \
        "mismatch vs folded/bf16 reference (tiled path)"
    assert jnp.allclose(y2, mlp_reference_fp32(x2, hidden_raw, out_raw), atol=2e-2, rtol=2e-2), \
        "mismatch vs fp32 reference (tiled path)"

    # --- no final Linear (output_layer=False) branch -------------------------
    hid_only, _ = fold_params(hidden_raw, None)
    y3 = jax.block_until_ready(mlp_forward(x, hid_only, None))
    assert y3.shape == (8, embed_dims[-1]), y3.shape
    assert jnp.allclose(y3, mlp_reference_fp32(x, hidden_raw, None), atol=1e-2, rtol=1e-2), \
        "mismatch vs fp32 reference (no output layer)"

    print("KERNEL_OK")
</pallas_src>

<mosaic_0001>
module attributes {stable_mosaic.version = 11 : i64} {
  func.func @kernel(%arg0: memref<8x32xf32, #tpu.memory_space<vmem>>, %arg1: memref<32x64xbf16, #tpu.memory_space<vmem>>, %arg2: memref<1x64xf32, #tpu.memory_space<vmem>>, %arg3: memref<64x32xbf16, #tpu.memory_space<vmem>>, %arg4: memref<1x32xf32, #tpu.memory_space<vmem>>, %arg5: memref<1x32xf32, #tpu.memory_space<vmem>>, %arg6: memref<1x1xf32, #tpu.memory_space<vmem>>, %arg7: memref<8x1xf32, #tpu.memory_space<vmem>>) attributes {dimension_semantics = [], scalar_prefetch = 0 : i64, scratch_operands = 0 : i64, tpu.core_type = #tpu.core_type<tc>} {
    %c0 = arith.constant 0 : index
    %c0_0 = arith.constant 0 : index
    %0 = vector.load %arg0[%c0, %c0_0] : memref<8x32xf32, #tpu.memory_space<vmem>>, vector<8x32xf32>
    %1 = arith.truncf %0 : vector<8x32xf32> to vector<8x32xbf16>
    %c0_1 = arith.constant 0 : index
    %c0_2 = arith.constant 0 : index
    %2 = vector.load %arg1[%c0_1, %c0_2] : memref<32x64xbf16, #tpu.memory_space<vmem>>, vector<32x64xbf16>
    %c0_3 = arith.constant 0 : index
    %c0_4 = arith.constant 0 : index
    %3 = vector.load %arg2[%c0_3, %c0_4] : memref<1x64xf32, #tpu.memory_space<vmem>>, vector<1x64xf32>
    %cst = arith.constant dense<0.000000e+00> : vector<8x64xf32>
    %4 = tpu.matmul %1, %2, %cst {dimension_numbers = #tpu.dot_dimension_numbers<[1], [0], [0], [1], [0, 0, 1, 1], [], []>} : vector<8x32xbf16>, vector<32x64xbf16>, vector<8x64xf32> -> vector<8x64xf32>
    %5 = vector.broadcast %3 : vector<1x64xf32> to vector<8x64xf32>
    %6 = arith.addf %4, %5 : vector<8x64xf32>
    %7 = arith.truncf %6 : vector<8x64xf32> to vector<8x64xbf16>
    %cst_5 = arith.constant 0.000000e+00 : bf16
    %8 = vector.broadcast %cst_5 : bf16 to vector<8x64xbf16>
    %9 = arith.maximumf %7, %8 : vector<8x64xbf16>
    %c0_6 = arith.constant 0 : index
    %c0_7 = arith.constant 0 : index
    %10 = vector.load %arg3[%c0_6, %c0_7] : memref<64x32xbf16, #tpu.memory_space<vmem>>, vector<64x32xbf16>
    %c0_8 = arith.constant 0 : index
    %c0_9 = arith.constant 0 : index
    %11 = vector.load %arg4[%c0_8, %c0_9] : memref<1x32xf32, #tpu.memory_space<vmem>>, vector<1x32xf32>
    %cst_10 = arith.constant dense<0.000000e+00> : vector<8x32xf32>
    %12 = tpu.matmul %9, %10, %cst_10 {dimension_numbers = #tpu.dot_dimension_numbers<[1], [0], [0], [1], [0, 0, 1, 1], [], []>} : vector<8x64xbf16>, vector<64x32xbf16>, vector<8x32xf32> -> vector<8x32xf32>
    %13 = vector.broadcast %11 : vector<1x32xf32> to vector<8x32xf32>
    %14 = arith.addf %12, %13 : vector<8x32xf32>
    %cst_11 = arith.constant 0.000000e+00 : f32
    %15 = vector.broadcast %cst_11 : f32 to vector<8x32xf32>
    %16 = arith.maximumf %14, %15 : vector<8x32xf32>
    %c0_12 = arith.constant 0 : index
    %c0_13 = arith.constant 0 : index
    %17 = vector.load %arg5[%c0_12, %c0_13] : memref<1x32xf32, #tpu.memory_space<vmem>>, vector<1x32xf32>
    %c0_14 = arith.constant 0 : index
    %c0_15 = arith.constant 0 : index
    %18 = vector.load %arg6[%c0_14, %c0_15] : memref<1x1xf32, #tpu.memory_space<vmem>>, vector<1x1xf32>
    %19 = vector.broadcast %17 : vector<1x32xf32> to vector<8x32xf32>
    %20 = arith.mulf %16, %19 : vector<8x32xf32>
    %cst_16 = arith.constant dense<0.000000e+00> : vector<8xf32>
    %21 = vector.multi_reduction <add>, %20, %cst_16 [1] : vector<8x32xf32> to vector<8xf32>
    %22 = vector.shape_cast %21 : vector<8xf32> to vector<8x1xf32>
    %23 = vector.broadcast %18 : vector<1x1xf32> to vector<8x1xf32>
    %24 = arith.addf %22, %23 : vector<8x1xf32>
    %c0_17 = arith.constant 0 : index
    %c0_18 = arith.constant 0 : index
    %25 = vector.load %arg7[%c0_17, %c0_18] : memref<8x1xf32, #tpu.memory_space<vmem>>, vector<8x1xf32>
    tpu.vector_store %arg7[%c0_17, %c0_18], %24 {strides = array<i32>} : memref<8x1xf32, #tpu.memory_space<vmem>>, vector<8x1xf32>,
    return
  }
}

</mosaic_0001>

<llo_original>
// kernel: mlp_forward.1
$region0: #{mlp_forward.1}
  #allocation0 [shape = 'u32[]', space=smem, size = 0x4, offset = 0x4, fixed_abs, tag = 'smem constant byte address 0x4 - core index']
  #allocation1 [shape = 'u32[144,128]{1,0:T(1,128)}', space=vmem, size = 0x12000, scoped, tag = 'internal scratch']
  #allocation2 [shape = 'f32[1,1]{1,0:T(1,128)S(1)}', space=vmem, size = 0x200, scoped, tag = 'scoped memory for mlp_forward.1']
  %s0 = inlined_call_operand.vmem [shape: f32[8,32], index: 0, kind: input, shape index: {}]
  %s1 = inlined_call_operand.vmem [shape: bf16[32,64], index: 1, kind: input, shape index: {}]
  %s2 = inlined_call_operand.vmem [shape: f32[1,64], index: 2, kind: input, shape index: {}]
  %s3 = inlined_call_operand.vmem [shape: bf16[64,32], index: 3, kind: input, shape index: {}]
  %s4 = inlined_call_operand.vmem [shape: f32[1,32], index: 4, kind: input, shape index: {}]
  %s5 = inlined_call_operand.vmem [shape: f32[1,32], index: 5, kind: input, shape index: {}]
  %s6 = inlined_call_operand.<no memory space> [shape: f32[1,1], index: 6, kind: input, shape index: {}]
  %s7 = inlined_call_operand.vmem [shape: f32[8,1], index: 7, kind: output, shape index: {}]
  %s8 = sld [smem:[#allocation0]]
  $region38: #{mlp_forward.1} parent=0
    _
  %s10 = ssub.s32 1, %s8
  %s11 = scalar_select 0, %s10, %s8
  %v12 = vstv %s6
  %13 = vst [vmem:[#allocation2] sm:$0x1] %v12
  // Predicated region
  $region2: #{mlp_forward.1} parent=0 // pred_check
    _
  $region3: #{mlp_forward.1} parent=0 // pred_check_branch
    %15 = sbr.rel (0) target = $region5
  $region4: #{mlp_forward.1} parent=0 // pred_region
    _
  $region5: #{mlp_forward.1} parent=0 // pred_fallthru
    _
  // Predicated region
  $region6: #{mlp_forward.1} parent=0 // pred_check
    _
  $region7: #{mlp_forward.1} parent=0 // pred_check_branch
    %17 = sbr.rel (0) target = $region9
  $region8: #{mlp_forward.1} parent=0 // pred_region
    _
  $region9: #{mlp_forward.1} parent=0 // pred_fallthru
    _
  // Predicated region
  $region10: #{mlp_forward.1} parent=0 // pred_check
    _
  $region11: #{mlp_forward.1} parent=0 // pred_check_branch
    %19 = sbr.rel (0) target = $region13
  $region12: #{mlp_forward.1} parent=0 // pred_region
    _
  $region13: #{mlp_forward.1} parent=0 // pred_fallthru
    _
  // Predicated region
  $region14: #{mlp_forward.1} parent=0 // pred_check
    _
  $region15: #{mlp_forward.1} parent=0 // pred_check_branch
    %21 = sbr.rel (0) target = $region17
  $region16: #{mlp_forward.1} parent=0 // pred_region
    _
  $region17: #{mlp_forward.1} parent=0 // pred_fallthru
    _
  // Predicated region
  $region18: #{mlp_forward.1} parent=0 // pred_check
    _
  $region19: #{mlp_forward.1} parent=0 // pred_check_branch
    %23 = sbr.rel (0) target = $region21
  $region20: #{mlp_forward.1} parent=0 // pred_region
    _
  $region21: #{mlp_forward.1} parent=0 // pred_fallthru
    _
  // Predicated region
  $region22: #{mlp_forward.1} parent=0 // pred_check
    _
  $region23: #{mlp_forward.1} parent=0 // pred_check_branch
    %25 = sbr.rel (0) target = $region25
  $region24: #{mlp_forward.1} parent=0 // pred_region
    _
  $region25: #{mlp_forward.1} parent=0 // pred_fallthru
    _
  // Predicated region
  $region26: #{mlp_forward.1} parent=0 // pred_check
    _
  $region27: #{mlp_forward.1} parent=0 // pred_check_branch
    %27 = sbr.rel (0) target = $region29
  $region28: #{mlp_forward.1} parent=0 // pred_region
    _
  $region29: #{mlp_forward.1} parent=0 // pred_fallthru
    _
  %v29 = vld [vmem:[%s0] sm:$0xff]
  %v30 = vpack.c.bf16 %v29, %v29
  %v31 = vld [vmem:[%s1] sm:$0xf]
  %v32 = vld [vmem:[%s1 + $0x4] sm:$0xf]
  %v33 = vld [vmem:[%s1 + $0x8] sm:$0xf]
  %v34 = vld [vmem:[%s1 + $0xc] sm:$0xf]
  %v35 = vld [vmem:[%s2] sm:$0x1]
  %v37 = vlaneseq
  %v38 = vshrl.u32 %v37, 7
  %v39 = vsub.s32 0, %v38
  %v40 = vrot.slane %v35, %v39
  %v46 = vunpack.c.l.b16 %v31
  %v47 = vunpack.c.l.b16 %v32
  %v48 = vunpack.c.l.b16 %v33
  %v49 = vunpack.c.l.b16 %v34
  %v50 = vpack.c.b16 %v47, %v46
  %v51 = vpack.c.b16 %v49, %v48
  %vm54 = vcmask 261120
  %v56 = vsel %vm54, %v30, 0
  %58 = vmatprep.subr.bf16.mxu0 0
  %59 = vmatpush1.bf16.msra.mxu0 0
  %60 = vmatprep.subr.bf16.mxu0 0
  %61 = vmatpush1.bf16.msra.mxu0 0
  %62 = vmatprep.subr.bf16.mxu0 0
  %63 = vmatpush1.bf16.msra.mxu0 0
  %64 = vmatprep.subr.bf16.mxu0 0
  %65 = vmatpush1.bf16.msra.mxu0 0
  %66 = vmatprep.subr.bf16.mxu0 0
  %67 = vmatpush1.bf16.msra.mxu0 0
  %68 = vmatprep.subr.bf16.mxu0 0
  %69 = vmatpush1.bf16.msra.mxu0 0
  %70 = vmatprep.subr.bf16.mxu0 0
  %71 = vmatpush1.bf16.msra.mxu0 %v51
  %72 = vmatprep.subr.bf16.mxu0 0
  %73 = vmatpush1.bf16.msra.mxu0 %v50
  %74 = vmatprep.subr.bf16.mxu0 0
  %75 = vmatpush2.bf16.msra.mxu0 0
  %76 = vmatprep.subr.bf16.mxu0 0
  %77 = vmatpush2.bf16.msra.mxu0 0
  %78 = vmatprep.subr.bf16.mxu0 0
  %79 = vmatpush2.bf16.msra.mxu0 0
  %80 = vmatprep.subr.bf16.mxu0 0
  %81 = vmatpush2.bf16.msra.mxu0 0
  %82 = vmatprep.subr.bf16.mxu0 0
  %83 = vmatpush2.bf16.msra.mxu0 0
  %84 = vmatprep.subr.bf16.mxu0 0
  %85 = vmatpush2.bf16.msra.mxu0 0
  %86 = vmatprep.subr.bf16.mxu0 0
  %87 = vmatpush2.bf16.msra.mxu0 0
  %88 = vmatprep.subr.bf16.mxu0 0
  %89 = vmatpush2.bf16.msra.mxu0 0
  %90 = vmatprep.mubr.bf16.mxu0 0
  %91 = vmatmul.mubr.bf16.gmra.mxu0 %v56
  %v92 = vpop.f32.mrf.mxu0
  %v93 = vadd.f32 %v40, %v92
  %v94 = vpop.f32.mrf.mxu0
  %v95 = vpop.f32.mrf.mxu0
  %v96 = vpop.f32.mrf.mxu0
  %97 = vdwg.mxu0
  %v98 = vpack.c.bf16 %v93, %v93
  %v99 = vmax.bf16 %v98, 0
  %v100 = vld [vmem:[%s3] sm:$0xf]
  %v101 = vld [vmem:[%s3 + $0x4] sm:$0xf]
  %v102 = vld [vmem:[%s3 + $0x8] sm:$0xf]
  %v103 = vld [vmem:[%s3 + $0xc] sm:$0xf]
  %v104 = vld [vmem:[%s3 + $0x10] sm:$0xf]
  %v105 = vld [vmem:[%s3 + $0x14] sm:$0xf]
  %v106 = vld [vmem:[%s3 + $0x18] sm:$0xf]
  %v107 = vld [vmem:[%s3 + $0x1c] sm:$0xf]
  %v108 = vld [vmem:[%s4] sm:$0x1]
  %v110 = vlaneseq
  %v111 = vshrl.u32 %v110, 7
  %v112 = vsub.s32 0, %v111
  %v113 = vrot.slane %v108, %v112
  %v123 = vunpack.c.l.b16 %v100
  %v124 = vunpack.c.l.b16 %v101
  %v125 = vunpack.c.l.b16 %v102
  %v126 = vunpack.c.l.b16 %v103
  %v127 = vunpack.c.l.b16 %v104
  %v128 = vunpack.c.l.b16 %v105
  %v129 = vunpack.c.l.b16 %v106
  %v130 = vunpack.c.l.b16 %v107
  %v131 = vpack.c.b16 %v124, %v123
  %v132 = vpack.c.b16 %v126, %v125
  %v133 = vpack.c.b16 %v128, %v127
  %v134 = vpack.c.b16 %v130, %v129
  %vm139 = vcmask 523264
  %v141 = vsel %vm139, %v99, 0
  %143 = vmatprep.subr.bf16.mxu0 0
  %144 = vmatpush1.bf16.msra.mxu0 0
  %145 = vmatprep.subr.bf16.mxu0 0
  %146 = vmatpush1.bf16.msra.mxu0 0
  %147 = vmatprep.subr.bf16.mxu0 0
  %148 = vmatpush1.bf16.msra.mxu0 0
  %149 = vmatprep.subr.bf16.mxu0 0
  %150 = vmatpush1.bf16.msra.mxu0 0
  %151 = vmatprep.subr.bf16.mxu0 0
  %152 = vmatpush1.bf16.msra.mxu0 %v134
  %153 = vmatprep.subr.bf16.mxu0 0
  %154 = vmatpush1.bf16.msra.mxu0 %v133
  %155 = vmatprep.subr.bf16.mxu0 0
  %156 = vmatpush1.bf16.msra.mxu0 %v132
  %157 = vmatprep.subr.bf16.mxu0 0
  %158 = vmatpush1.bf16.msra.mxu0 %v131
  %159 = vmatprep.subr.bf16.mxu0 0
  %160 = vmatpush2.bf16.msra.mxu0 0
  %161 = vmatprep.subr.bf16.mxu0 0
  %162 = vmatpush2.bf16.msra.mxu0 0
  %163 = vmatprep.subr.bf16.mxu0 0
  %164 = vmatpush2.bf16.msra.mxu0 0
  %165 = vmatprep.subr.bf16.mxu0 0
  %166 = vmatpush2.bf16.msra.mxu0 0
  %167 = vmatprep.subr.bf16.mxu0 0
  %168 = vmatpush2.bf16.msra.mxu0 0
  %169 = vmatprep.subr.bf16.mxu0 0
  %170 = vmatpush2.bf16.msra.mxu0 0
  %171 = vmatprep.subr.bf16.mxu0 0
  %172 = vmatpush2.bf16.msra.mxu0 0
  %173 = vmatprep.subr.bf16.mxu0 0
  %174 = vmatpush2.bf16.msra.mxu0 0
  %175 = vmatprep.mubr.bf16.mxu0 0
  %176 = vmatmul.mubr.bf16.gmra.mxu0 %v141
  %v177 = vpop.f32.mrf.mxu0
  %v178 = vadd.f32 %v113, %v177
  %v179 = vpop.f32.mrf.mxu0
  %v180 = vpop.f32.mrf.mxu0
  %v181 = vpop.f32.mrf.mxu0
  %182 = vdwg.mxu0
  %v183 = vmax.f32 %v178, 0.0
  %v184 = vld [vmem:[%s5] sm:$0x1]
  %v185 = vld [vmem:[#allocation2] sm:$0x1]
  %v187 = vlaneseq
  %v188 = vshrl.u32 %v187, 7
  %v189 = vsub.s32 0, %v188
  %v190 = vrot.slane %v184, %v189
  %v192 = vmul.f32 %v183, %v190
  %v193 = vsel %vm54, %v192, 0.0
  %194 = vadd.xlane.f32.xlu0 %v193
  %v195 = vpop.xlane.xlu0 %194
  %v197 = vlaneseq
  %v198 = vshrl.u32 %v197, 7
  %v199 = vsub.s32 0, %v198
  %v200 = vrot.slane %v185, %v199
  %v202 = vadd.f32 %v195, %v200
  %vm203 = vcmask 7168
  %204 = vst.msk [vmem:[%s7] sm:$0xff] %vm203, %v202
  // Predicated region
  $region30: #{mlp_forward.1} parent=0 // pred_check
    _
  $region31: #{mlp_forward.1} parent=0 // pred_check_branch
    %206 = sbr.rel (0) target = $region33
  $region32: #{mlp_forward.1} parent=0 // pred_region
    _
  $region33: #{mlp_forward.1} parent=0 // pred_fallthru
    _
  // Predicated region
  $region34: #{mlp_forward.1} parent=0 // pred_check
    _
  $region35: #{mlp_forward.1} parent=0 // pred_check_branch
    %208 = sbr.rel (0) target = $region37
  $region36: #{mlp_forward.1} parent=0 // pred_region
    _
  $region37: #{mlp_forward.1} parent=0 // pred_fallthru
    _

</llo_original>
